<compile_context>
chip_gen: v6e
topology: v6e:2x2x1
jax: 0.10.0
libtpu: 0.0.40
codegen_flags: <defaults>
</compile_context>

<pallas_src>
import math

import jax
import jax.numpy as jnp
from jax.experimental import pallas as pl
from jax.experimental.pallas import tpu as pltpu

LANE = 128


def _round_up(x, m):
    return -(-x // m) * m


# ----------------------------- kernels --------------------------------------

def _project_kernel(x_ref, w_ref, o_ref):
    """P0 = X @ W0 (row-tiled; O(N*C*D) flops, negligible vs aggregation)."""
    o_ref[...] = jnp.dot(x_ref[...], w_ref[...],
                         preferred_element_type=jnp.float32)


def _gcn_layer_kernel(a_ref, p_ref, vec_ref, wnext_ref, o_ref, acc_ref):
    """GCN layer with the next layer's weight projection fused.

    acc  = sum_k A[i-tile, k-tile] @ P[k-tile]      (reduction grid axis 1)
    h    = BN(relu(acc + gcn_bias))                 (eval-mode folded BN)
    out  = h @ W_next                               (pre-projected for the
                                                     next layer's aggregation)
    """
    k = pl.program_id(1)

    @pl.when(k == 0)
    def _():
        acc_ref[...] = jnp.zeros_like(acc_ref)

    acc_ref[...] += jnp.dot(a_ref[...], p_ref[...],
                            preferred_element_type=jnp.float32)

    @pl.when(k == pl.num_programs(1) - 1)
    def _():
        vecs = vec_ref[...]                 # rows: gcn_bias, bn_scale, bn_shift
        h = jnp.maximum(acc_ref[...] + vecs[0:1, :], 0.0)
        h = h * vecs[1:2, :] + vecs[2:3, :]
        o_ref[...] = jnp.dot(h, wnext_ref[...],
                             preferred_element_type=jnp.float32
                             ).astype(o_ref.dtype)


def _gcn_head_kernel(a_ref, p_ref, vec_ref, w1_ref, w2_ref, b2_ref,
                     o_ref, acc_ref):
    """Last GCN layer fused with lin1 -> relu -> lin2 -> log_softmax."""
    k = pl.program_id(1)

    @pl.when(k == 0)
    def _():
        acc_ref[...] = jnp.zeros_like(acc_ref)

    acc_ref[...] += jnp.dot(a_ref[...], p_ref[...],
                            preferred_element_type=jnp.float32)

    @pl.when(k == pl.num_programs(1) - 1)
    def _():
        vecs = vec_ref[...]     # rows: gcn_bias, bn_scale, bn_shift, lin1_bias
        h = jnp.maximum(acc_ref[...] + vecs[0:1, :], 0.0)
        h = h * vecs[1:2, :] + vecs[2:3, :]
        # lin1 + relu (dropout is identity in eval mode)
        y = jnp.maximum(
            jnp.dot(h, w1_ref[...], preferred_element_type=jnp.float32)
            + vecs[3:4, :], 0.0)
        # lin2 (lane-padded; padded bias = -1e30 kills padded logits)
        logits = (jnp.dot(y, w2_ref[...], preferred_element_type=jnp.float32)
                  + b2_ref[...])
        m = jnp.max(logits, axis=-1, keepdims=True)
        s = logits - m
        lse = jnp.log(jnp.sum(jnp.exp(s), axis=-1, keepdims=True))
        o_ref[...] = (s - lse).astype(o_ref.dtype)


# --------------------------- pallas_call wrappers ----------------------------

def _project_call(x, w, tile_n):
    n_pad, c = x.shape
    d_pad = w.shape[1]
    return pl.pallas_call(
        _project_kernel,
        out_shape=jax.ShapeDtypeStruct((n_pad, d_pad), jnp.float32),
        grid=(n_pad // tile_n,),
        in_specs=[
            pl.BlockSpec((tile_n, c), lambda i: (i, 0)),     # node features tile
            pl.BlockSpec((c, d_pad), lambda i: (0, 0)),      # W0 (resident)
        ],
        out_specs=pl.BlockSpec((tile_n, d_pad), lambda i: (i, 0)),
        compiler_params=pltpu.CompilerParams(
            dimension_semantics=("parallel",)),
    )(x, w)


def _gcn_layer_call(a_hat, p, vec, w_next, tile_n, tile_k):
    n_pad, d_pad = p.shape
    return pl.pallas_call(
        _gcn_layer_kernel,
        out_shape=jax.ShapeDtypeStruct((n_pad, d_pad), jnp.float32),
        grid=(n_pad // tile_n, n_pad // tile_k),
        in_specs=[
            pl.BlockSpec((tile_n, tile_k), lambda i, k: (i, k)),  # A tile
            pl.BlockSpec((tile_k, d_pad), lambda i, k: (k, 0)),   # projected acts
            pl.BlockSpec((8, d_pad), lambda i, k: (0, 0)),        # packed vectors
            pl.BlockSpec((d_pad, d_pad), lambda i, k: (0, 0)),    # next GCN weight
        ],
        out_specs=pl.BlockSpec((tile_n, d_pad), lambda i, k: (i, 0)),
        scratch_shapes=[pltpu.VMEM((tile_n, d_pad), jnp.float32)],
        compiler_params=pltpu.CompilerParams(
            dimension_semantics=("parallel", "arbitrary")),
    )(a_hat, p, vec, w_next)


def _gcn_head_call(a_hat, p, vec, w1, w2p, b2p, tile_n, tile_k):
    n_pad, d_pad = p.shape
    o_pad = w2p.shape[1]
    return pl.pallas_call(
        _gcn_head_kernel,
        out_shape=jax.ShapeDtypeStruct((n_pad, o_pad), jnp.float32),
        grid=(n_pad // tile_n, n_pad // tile_k),
        in_specs=[
            pl.BlockSpec((tile_n, tile_k), lambda i, k: (i, k)),  # A tile
            pl.BlockSpec((tile_k, d_pad), lambda i, k: (k, 0)),   # projected acts
            pl.BlockSpec((8, d_pad), lambda i, k: (0, 0)),        # packed vectors
            pl.BlockSpec((d_pad, d_pad), lambda i, k: (0, 0)),    # lin1 weight
            pl.BlockSpec((d_pad, o_pad), lambda i, k: (0, 0)),    # lin2 weight
            pl.BlockSpec((1, o_pad), lambda i, k: (0, 0)),        # lin2 bias
        ],
        out_specs=pl.BlockSpec((tile_n, o_pad), lambda i, k: (i, 0)),
        scratch_shapes=[pltpu.VMEM((tile_n, d_pad), jnp.float32)],
        compiler_params=pltpu.CompilerParams(
            dimension_semantics=("parallel", "arbitrary")),
    )(a_hat, p, vec, w1, w2p, b2p)


# ------------------------------ model wrapper --------------------------------

def gcn_norm_dense(edge_index, num_nodes):
    """Dense D^{-1/2} (A + I) D^{-1/2} (edge weights = 1), built with plain JAX."""
    src, dst = edge_index[0], edge_index[1]
    a = jnp.zeros((num_nodes, num_nodes), jnp.float32)
    a = a.at[dst, src].add(1.0)                                # messages src -> dst
    a = a + jnp.eye(num_nodes, dtype=jnp.float32)              # self loops
    deg = jnp.sum(a, axis=1)
    dinv = jnp.where(deg > 0, jax.lax.rsqrt(deg), 0.0)
    return a * dinv[:, None] * dinv[None, :]


def _choose_tiles(n, tile_n_req):
    tile_n = max(8, _round_up(min(tile_n_req, _round_up(n, 8)), 8))
    if n <= 4096:
        n_pad = _round_up(n, tile_n)
        tile_k = n_pad                    # single K step (full-extent block)
    else:
        tile_k = 512                      # lane-aligned K tile for big graphs
        n_pad = _round_up(n, math.lcm(tile_n, tile_k))
    return tile_n, tile_k, n_pad


def i2bgnn_forward(x, a_hat, params, *, tile_n=256, bn_eps=1e-5):
    """Eval-mode forward of I2BGNN.

    x:      (N, in_channels) node features.
    a_hat:  (N, N) dense normalized adjacency (gcn_norm_dense).
    params: gcn_w[i] (C_in, dim) pre-transposed, gcn_b[i] (dim,),
            bn_{gamma,beta,mean,var}[i] (dim,),
            lin1_w (dim, dim), lin1_b (dim,), lin2_w (dim, out), lin2_b (out,).
    Returns (N, out) log-probabilities.
    """
    n, c_in = x.shape
    num_layers = len(params["gcn_w"])
    dim = params["gcn_w"][0].shape[1]
    out_ch = params["lin2_w"].shape[1]

    tile_n, tile_k, n_pad = _choose_tiles(n, tile_n)
    d_pad = _round_up(max(dim, LANE), LANE)
    o_pad = _round_up(max(out_ch, LANE), LANE)

    xp = jnp.pad(x.astype(jnp.float32), ((0, n_pad - n), (0, 0)))
    ap = jnp.pad(a_hat.astype(jnp.float32),
                 ((0, n_pad - n), (0, n_pad - n)))

    def pad2(a, rows, cols):
        a = jnp.asarray(a, jnp.float32)
        return jnp.pad(a, ((0, rows - a.shape[0]), (0, cols - a.shape[1])))

    def pack_vec(i, with_lin1_bias):
        scale = params["bn_gamma"][i] * jax.lax.rsqrt(params["bn_var"][i] + bn_eps)
        shift = params["bn_beta"][i] - params["bn_mean"][i] * scale
        v = jnp.zeros((8, d_pad), jnp.float32)
        v = v.at[0, :dim].set(params["gcn_b"][i])
        v = v.at[1, :dim].set(scale)
        v = v.at[2, :dim].set(shift)
        if with_lin1_bias:
            v = v.at[3, :dim].set(params["lin1_b"])
        return v

    # Layer-0 projection; all later projections are fused into the previous
    # layer's kernel so the inter-layer intermediate is a single (N, d_pad).
    w0 = pad2(params["gcn_w"][0], c_in, d_pad)
    p = _project_call(xp, w0, tile_n)

    for i in range(num_layers - 1):
        vec = pack_vec(i, with_lin1_bias=False)
        w_next = pad2(params["gcn_w"][i + 1], d_pad, d_pad)
        p = _gcn_layer_call(ap, p, vec, w_next, tile_n, tile_k)

    # Last GCN layer fused with the MLP head.
    i = num_layers - 1
    vec = pack_vec(i, with_lin1_bias=True)
    w1 = pad2(params["lin1_w"], d_pad, d_pad)
    w2 = pad2(params["lin2_w"], d_pad, o_pad)
    b2 = jnp.full((1, o_pad), -1e30, jnp.float32).at[0, :out_ch].set(
        params["lin2_b"].astype(jnp.float32))

    out_pad = _gcn_head_call(ap, p, vec, w1, w2, b2, tile_n, tile_k)
    return out_pad[:n, :out_ch]


# ------------------------------ reference ------------------------------------

def reference_forward(x, a_hat, params, bn_eps=1e-5):
    h = x.astype(jnp.float32)
    for i in range(len(params["gcn_w"])):
        z = a_hat @ h @ params["gcn_w"][i] + params["gcn_b"][i]
        h = jnp.maximum(z, 0.0)
        scale = params["bn_gamma"][i] * jax.lax.rsqrt(params["bn_var"][i] + bn_eps)
        shift = params["bn_beta"][i] - params["bn_mean"][i] * scale
        h = h * scale + shift
    y = jnp.maximum(h @ params["lin1_w"] + params["lin1_b"], 0.0)
    logits = y @ params["lin2_w"] + params["lin2_b"]
    return jax.nn.log_softmax(logits, axis=-1)


# --------------------------------- demo ---------------------------------------

if __name__ == "__main__":
    key = jax.random.PRNGKey(0)
    keys = jax.random.split(key, 4)

    N, in_channels, dim, out_channels, num_layers = 16, 8, 32, 2, 2
    num_edges = 40

    x = jax.random.normal(keys[0], (N, in_channels), jnp.float32)
    src = jax.random.randint(keys[1], (num_edges,), 0, N)
    dst = jax.random.randint(keys[2], (num_edges,), 0, N)
    edge_index = jnp.stack([src, dst])
    a_hat = gcn_norm_dense(edge_index, N)

    def randn(k, shape, scale=0.1):
        return jax.random.normal(k, shape, jnp.float32) * scale

    kp = jax.random.split(keys[3], 6 * num_layers + 4)
    gcn_w, gcn_b = [], []
    bn_gamma, bn_beta, bn_mean, bn_var = [], [], [], []
    for i in range(num_layers):
        c_in = in_channels if i == 0 else dim
        gcn_w.append(randn(kp[6 * i + 0], (c_in, dim)))     # pre-transposed (in, out)
        gcn_b.append(randn(kp[6 * i + 1], (dim,)))
        bn_gamma.append(1.0 + randn(kp[6 * i + 2], (dim,)))
        bn_beta.append(randn(kp[6 * i + 3], (dim,)))
        bn_mean.append(randn(kp[6 * i + 4], (dim,)))
        bn_var.append(0.5 + jnp.abs(randn(kp[6 * i + 5], (dim,), 1.0)))

    params = dict(
        gcn_w=gcn_w, gcn_b=gcn_b,
        bn_gamma=bn_gamma, bn_beta=bn_beta, bn_mean=bn_mean, bn_var=bn_var,
        lin1_w=randn(kp[-4], (dim, dim)),
        lin1_b=randn(kp[-3], (dim,)),
        lin2_w=randn(kp[-2], (dim, out_channels)),
        lin2_b=randn(kp[-1], (out_channels,)),
    )

    out = i2bgnn_forward(x, a_hat, params, tile_n=8)   # grid of 2 row tiles
    out = jax.block_until_ready(out)

    ref = reference_forward(x, a_hat, params)
    assert out.shape == (N, out_channels)
    assert jnp.allclose(out, ref, atol=1e-4, rtol=1e-4), \
        float(jnp.max(jnp.abs(out - ref)))

    print("KERNEL_OK")
</pallas_src>

<mosaic_0001>
module attributes {stable_mosaic.version = 11 : i64} {
  func.func @_project_kernel(%arg0: i32, %arg1: memref<8x8xf32, #tpu.memory_space<vmem>>, %arg2: memref<8x128xf32, #tpu.memory_space<vmem>>, %arg3: memref<8x128xf32, #tpu.memory_space<vmem>>) attributes {dimension_semantics = [#tpu.dimension_semantics<parallel>], iteration_bounds = array<i64: 2>, scalar_prefetch = 0 : i64, scratch_operands = 0 : i64, tpu.core_type = #tpu.core_type<tc>, window_params = [{transform_indices = @transform_0, window_bounds = array<i64: 8, 8>}, {pipeline_mode = #tpu.pipeline_mode<synchronous>, transform_indices = @transform_1, window_bounds = array<i64: 8, 128>}, {transform_indices = @transform_2, window_bounds = array<i64: 8, 128>}]} {
    %c0 = arith.constant 0 : index
    %c0_0 = arith.constant 0 : index
    %0 = vector.load %arg1[%c0, %c0_0] : memref<8x8xf32, #tpu.memory_space<vmem>>, vector<8x8xf32>
    %c0_1 = arith.constant 0 : index
    %c0_2 = arith.constant 0 : index
    %1 = vector.load %arg2[%c0_1, %c0_2] : memref<8x128xf32, #tpu.memory_space<vmem>>, vector<8x128xf32>
    %cst = arith.constant dense<0.000000e+00> : vector<8x128xf32>
    %2 = tpu.matmul %0, %1, %cst {dimension_numbers = #tpu.dot_dimension_numbers<[1], [0], [0], [1], [0, 0, 1, 1], [], []>} : vector<8x8xf32>, vector<8x128xf32>, vector<8x128xf32> -> vector<8x128xf32>
    %c0_3 = arith.constant 0 : index
    %c0_4 = arith.constant 0 : index
    %3 = vector.load %arg3[%c0_3, %c0_4] : memref<8x128xf32, #tpu.memory_space<vmem>>, vector<8x128xf32>
    tpu.vector_store %arg3[%c0_3, %c0_4], %2 {strides = array<i32>} : memref<8x128xf32, #tpu.memory_space<vmem>>, vector<8x128xf32>,
    return
  }
  func.func @transform_0(%arg0: i32) -> (i32, i32) {
    %c0_i32 = arith.constant 0 : i32
    %c0_i32_0 = arith.constant 0 : i32
    return %arg0, %c0_i32 : i32, i32
  }
  func.func @transform_1(%arg0: i32) -> (i32, i32) {
    %c0_i32 = arith.constant 0 : i32
    %c0_i32_0 = arith.constant 0 : i32
    %c0_i32_1 = arith.constant 0 : i32
    return %c0_i32, %c0_i32_0 : i32, i32
  }
  func.func @transform_2(%arg0: i32) -> (i32, i32) {
    %c0_i32 = arith.constant 0 : i32
    %c0_i32_0 = arith.constant 0 : i32
    return %arg0, %c0_i32 : i32, i32
  }
}

</mosaic_0001>

<llo_original>
// kernel: tpu_custom_call.1
$region0: #{tpu_custom_call.1}
  #allocation0 [shape = 'u32[]', space=smem, size = 0x4, offset = 0x4, fixed_abs, tag = 'smem constant byte address 0x4 - core index']
  #allocation1 [shape = 'u32[144,128]{1,0:T(1,128)}', space=vmem, size = 0x12000, scoped, tag = 'internal scratch']
  %s0 = inlined_call_operand.vmem [shape: f32[16,8], index: 0, kind: input, shape index: {}]
  %s1 = inlined_call_operand.vmem [shape: f32[8,128], index: 1, kind: input, shape index: {}]
  %s2 = inlined_call_operand.hbm [shape: f32[16,128], index: 2, kind: output, shape index: {}]
  %s3 = sld [smem:[#allocation0]]
  $region41: #{tpu_custom_call.1} parent=0
    _
  %s5 = ssub.s32 1, %s3
  %s6 = scalar_select 0, %s5, %s3
  $region1: #{tpu_custom_call.1} parent=0
    #allocation2 [shape = 'u8[8192]{0}', space=vmem, size = 0x2000, scoped, tag = 'output window, operand 0']
    #allocation3 [shape = 's32[2]{0}', space=sflag, size = 0x8, scoped, tag = 'scoped memory for tpu_custom_call.1']
    %7 = vsyncpa [#allocation3], 0
    %s8 = scalar_lea.sflag [#allocation3], 1
    %9 = vsyncpa %s8, 0
    loop: start=0, step=1, limit=4
    $region2: #{tpu_custom_call.1} parent=1 // loop_pre_header
      _
    $region3: #{tpu_custom_call.1} parent=1 // loop_header
      %s11 = sphi 0, %s15
      %p12 = scmp.ge.s32.totalorder %s11, 4
      %s21 = sphi 0, %s23
      %s24 = sphi 0, %s21
      %s25 = sphi 0, %s24
      %s41 = sphi 0, %s25
      %s45 = sphi 0, %s45
      %s47 = sphi 0, %s45
      %s48 = sphi 0, %s47
      %s62 = sphi 0, %s48
      %s68 = sphi 0, %s70
      %s71 = sphi 0, %s68
      %s72 = sphi 0, %s71
      %s88 = sphi 0, %s72
    $region4: #{tpu_custom_call.1} parent=1 // loop_header_branch
      %14 = sbr.rel (%p12) target = $region8
    $region5: #{tpu_custom_call.1} parent=1 // loop_body
      %s16 = ssub.s32 %s11, 1
      %s17 = ssub.s32 %s11, 2
      %s18 = sadd.s32 %s11, 1
      %s19 = ssub.s32 %s11, %s18
      %p20 = scmp.eq.s32.totalorder %s19, 0
      %s22 = sadd.s32 %s21, 1
      %s23 = scalar_select %p20, %s21, %s22
      %p26 = pneg %p20
      %p27 = scmp.eq.s32.totalorder %s11, 1
      %p28 = por %p26, %p27
      %p29 = scmp.ne.s32.totalorder %s21, %s24
      %p30 = scmp.eq.s32.totalorder %s11, 0
      %p31 = por %p29, %p30
      %p32 = scmp.ne.s32.totalorder %s21, %s24
      %p33 = scmp.eq.s32.totalorder %s16, 1
      %p34 = por %p32, %p33
      %p35 = scmp.ne.s32.totalorder %s24, %s25
      %p36 = scmp.eq.s32.totalorder %s16, 0
      %p37 = por %p35, %p36
      %p38 = scmp.ne.s32.totalorder %s24, %s25
      %p39 = scmp.eq.s32.totalorder %s17, 1
      %p40 = por %p38, %p39
      %p42 = scmp.ne.s32.totalorder %s25, %s41
      %p43 = scmp.eq.s32.totalorder %s17, 0
      %p44 = por %p42, %p43
      %s46 = sadd.s32 %s45, 1
      %p49 = scmp.eq.s32.totalorder %s11, 1
      %p50 = scmp.ne.s32.totalorder %s45, %s47
      %p51 = scmp.eq.s32.totalorder %s11, 0
      %p52 = por %p50, %p51
      %p53 = scmp.ne.s32.totalorder %s45, %s47
      %p54 = scmp.eq.s32.totalorder %s16, 1
      %p55 = por %p53, %p54
      %p56 = scmp.ne.s32.totalorder %s47, %s48
      %p57 = scmp.eq.s32.totalorder %s16, 0
      %p58 = por %p56, %p57
      %p59 = scmp.ne.s32.totalorder %s47, %s48
      %p60 = scmp.eq.s32.totalorder %s17, 1
      %p61 = por %p59, %p60
      %p63 = scmp.ne.s32.totalorder %s48, %s62
      %p64 = scmp.eq.s32.totalorder %s17, 0
      %p65 = por %p63, %p64
      %s66 = ssub.s32 %s11, %s18
      %p67 = scmp.eq.s32.totalorder %s66, 0
      %s69 = sadd.s32 %s68, 1
      %s70 = scalar_select %p67, %s68, %s69
      %p73 = pneg %p67
      %p74 = scmp.eq.s32.totalorder %s11, 1
      %p75 = por %p73, %p74
      %p76 = scmp.ne.s32.totalorder %s68, %s71
      %p77 = scmp.eq.s32.totalorder %s11, 0
      %p78 = por %p76, %p77
      %p79 = scmp.ne.s32.totalorder %s68, %s71
      %p80 = scmp.eq.s32.totalorder %s16, 1
      %p81 = por %p79, %p80
      %p82 = scmp.ne.s32.totalorder %s71, %s72
      %p83 = scmp.eq.s32.totalorder %s16, 0
      %p84 = por %p82, %p83
      %p85 = scmp.ne.s32.totalorder %s71, %s72
      %p86 = scmp.eq.s32.totalorder %s17, 1
      %p87 = por %p85, %p86
      %p89 = scmp.ne.s32.totalorder %s72, %s88
      %p90 = scmp.eq.s32.totalorder %s17, 0
      %p91 = por %p89, %p90
      %p92 = scmp.le.s32.totalorder 1, %s11
      %p93 = scmp.lt.s32.totalorder %s11, 3
      %p94 = pnand %p92, %p93
      %p95 = pneg %p94
      // Predicated region
      $region9: #{tpu_custom_call.1} parent=5 // pred_check
        _
      $region10: #{tpu_custom_call.1} parent=5 // pred_check_branch
        %97 = sbr.rel (%p94) target = $region12
      $region11: #{tpu_custom_call.1} parent=5 // pred_region
        %s98 = ssub.s32 %s11, 1
        // Predicated region
        $region13: #{tpu_custom_call.1} parent=11 // pred_check
          %p99 = pneg %p58
        $region14: #{tpu_custom_call.1} parent=11 // pred_check_branch
          %101 = sbr.rel (%p99) target = $region16
        $region15: #{tpu_custom_call.1} parent=11 // pred_region
          _
        $region16: #{tpu_custom_call.1} parent=11 // pred_fallthru
          _
      $region12: #{tpu_custom_call.1} parent=5 // pred_fallthru
        _
      %p102 = scmp.lt.s32.totalorder %s11, 2
      // Predicated region
      $region17: #{tpu_custom_call.1} parent=5 // pred_check
        %p103 = pneg %p102
      $region18: #{tpu_custom_call.1} parent=5 // pred_check_branch
        %105 = sbr.rel (%p103) target = $region20
      $region19: #{tpu_custom_call.1} parent=5 // pred_region
        // Predicated region
        $region21: #{tpu_custom_call.1} parent=19 // pred_check
          %p106 = pneg %p31
        $region22: #{tpu_custom_call.1} parent=19 // pred_check_branch
          %108 = sbr.rel (%p106) target = $region24
        $region23: #{tpu_custom_call.1} parent=19 // pred_region
          %p109 = scmp.lt.s32.totalorder %s11, 1
          %s110 = scalar_select %p109, %s11, 1
          %s111 = smul.addr %s110, 8
          %s112 = scalar_lea.vmem %s0, %s111
        $region24: #{tpu_custom_call.1} parent=19 // pred_fallthru
          _
      $region20: #{tpu_custom_call.1} parent=5 // pred_fallthru
        _
      %p113 = scmp.le.s32.totalorder 1, %s11
      %p114 = scmp.lt.s32.totalorder %s11, 3
      %p115 = pnand %p113, %p114
      %p116 = pneg %p115
      // Predicated region
      $region25: #{tpu_custom_call.1} parent=5 // pred_check
        _
      $region26: #{tpu_custom_call.1} parent=5 // pred_check_branch
        %118 = sbr.rel (%p115) target = $region28
      $region27: #{tpu_custom_call.1} parent=5 // pred_region
        %s119 = ssub.s32 %s11, 1
        %p120 = scmp.lt.s32.totalorder %s16, 1
        %s121 = scalar_select %p120, %s16, 1
        %s122 = smul.addr %s121, 8
        %s123 = scalar_lea.vmem %s0, %s122
        %p124 = pneg %p37
        %p125 = pneg %p34
        %p126 = pneg %p58
        %p127 = pneg %p55
        %p128 = pneg %p84
        %p129 = pneg %p81
        %s130 = sand.u32 %s71, 1
        %s131 = scalar_lea.sflag [#allocation3], %s130
        %s132 = sand.u32 %s71, 1
        %s133 = smul.addr %s132, 8
        %s134 = scalar_lea.vmem [#allocation2], %s133
        %p135 = scmp.lt.s32.totalorder %s16, 1
        %s136 = scalar_select %p135, %s16, 1
        %s137 = smul.addr %s136, 8
        %s138 = scalar_lea.vmem %s0, %s137
        %v139 = vld [vmem:[%s138] sm:$0xff]
        %v140 = vld [vmem:[%s1] sm:$0xff]
        %vm141 = vcmask 64512
        %v143 = vsel %vm141, %v139, 0
        %145 = vmatprep.subr.mxu0 0.0
        %146 = vmatpush1.msra.mxu0 0.0
        %147 = vmatprep.subr.mxu0 0.0
        %148 = vmatpush1.msra.mxu0 0.0
        %149 = vmatprep.subr.mxu0 0.0
        %150 = vmatpush1.msra.mxu0 0.0
        %151 = vmatprep.subr.mxu0 0.0
        %152 = vmatpush1.msra.mxu0 0.0
        %153 = vmatprep.subr.mxu0 0.0
        %154 = vmatpush1.msra.mxu0 0.0
        %155 = vmatprep.subr.mxu0 0.0
        %156 = vmatpush1.msra.mxu0 0.0
        %157 = vmatprep.subr.mxu0 0.0
        %158 = vmatpush1.msra.mxu0 0.0
        %159 = vmatprep.subr.mxu0 0.0
        %160 = vmatpush1.msra.mxu0 0.0
        %161 = vmatprep.subr.mxu0 0.0
        %162 = vmatpush1.msra.mxu0 0.0
        %163 = vmatprep.subr.mxu0 0.0
        %164 = vmatpush1.msra.mxu0 0.0
        %165 = vmatprep.subr.mxu0 0.0
        %166 = vmatpush1.msra.mxu0 0.0
        %167 = vmatprep.subr.mxu0 0.0
        %168 = vmatpush1.msra.mxu0 0.0
        %169 = vmatprep.subr.mxu0 0.0
        %170 = vmatpush1.msra.mxu0 0.0
        %171 = vmatprep.subr.mxu0 0.0
        %172 = vmatpush1.msra.mxu0 0.0
        %173 = vmatprep.subr.mxu0 0.0
        %174 = vmatpush1.msra.mxu0 0.0
        %175 = vmatprep.subr.mxu0 0.0
        %176 = vmatpush1.msra.mxu0 %v140
        %177 = vmatprep.subr.mxu0 0.0
        %178 = vmatpush2.msra.mxu0 0.0
        %179 = vmatprep.subr.mxu0 0.0
        %180 = vmatpush2.msra.mxu0 0.0
        %181 = vmatprep.subr.mxu0 0.0
        %182 = vmatpush2.msra.mxu0 0.0
        %183 = vmatprep.subr.mxu0 0.0
        %184 = vmatpush2.msra.mxu0 0.0
        %185 = vmatprep.subr.mxu0 0.0
        %186 = vmatpush2.msra.mxu0 0.0
        %187 = vmatprep.subr.mxu0 0.0
        %188 = vmatpush2.msra.mxu0 0.0
        %189 = vmatprep.subr.mxu0 0.0
        %190 = vmatpush2.msra.mxu0 0.0
        %191 = vmatprep.subr.mxu0 0.0
        %192 = vmatpush2.msra.mxu0 0.0
        %193 = vmatprep.subr.mxu0 0.0
        %194 = vmatpush2.msra.mxu0 0.0
        %195 = vmatprep.subr.mxu0 0.0
        %196 = vmatpush2.msra.mxu0 0.0
        %197 = vmatprep.subr.mxu0 0.0
        %198 = vmatpush2.msra.mxu0 0.0
        %199 = vmatprep.subr.mxu0 0.0
        %200 = vmatpush2.msra.mxu0 0.0
        %201 = vmatprep.subr.mxu0 0.0
        %202 = vmatpush2.msra.mxu0 0.0
        %203 = vmatprep.subr.mxu0 0.0
        %204 = vmatpush2.msra.mxu0 0.0
        %205 = vmatprep.subr.mxu0 0.0
        %206 = vmatpush2.msra.mxu0 0.0
        %207 = vmatprep.subr.mxu0 0.0
        %208 = vmatpush2.msra.mxu0 0.0
        %209 = vmatprep.mubr.f32.mxu0 0.0
        %210 = vmatmul.mubr.f32.gmra.mxu0 %v143
        %v211 = vpop.f32.mrf.mxu0
        %v212 = vadd.f32 0.0, %v211
        %v213 = vpop.f32.mrf.mxu0
        %214 = vdwg.mxu0
        %215 = vst [vmem:[%s134] sm:$0xff] %v212
        %s216 = sand.u32 %s71, 1
        %s217 = scalar_lea.sflag [#allocation3], %s216
        %s218 = sand.u32 %s71, 1
        %s219 = smul.addr %s218, 8
        %s220 = scalar_lea.vmem [#allocation2], %s219
        // Predicated region
        $region29: #{tpu_custom_call.1} parent=27 // pred_check
          %p221 = pneg %p81
        $region30: #{tpu_custom_call.1} parent=27 // pred_check_branch
          %223 = sbr.rel (%p221) target = $region32
        $region31: #{tpu_custom_call.1} parent=27 // pred_region
          %s225 = ssub.s32 128, 128
          %226 = vsyncadd %s217, %s225
          %s227 = smul.addr %s16, 128
          %s228 = scalar_lea.hbm %s2, %s227
          %s230 = sshll.u32 %s220, 4
          %s231 = int_to_ptr.vmem [resolvable:$true] %s230
          %233 = dma.vmem_to_hbm [thread:$0]  %s231, 128, %s228, %s217
        $region32: #{tpu_custom_call.1} parent=27 // pred_fallthru
          _
      $region28: #{tpu_custom_call.1} parent=5 // pred_fallthru
        _
      %p234 = scmp.le.s32.totalorder 2, %s11
      // Predicated region
      $region33: #{tpu_custom_call.1} parent=5 // pred_check
        %p235 = pneg %p234
      $region34: #{tpu_custom_call.1} parent=5 // pred_check_branch
        %237 = sbr.rel (%p235) target = $region36
      $region35: #{tpu_custom_call.1} parent=5 // pred_region
        %s238 = ssub.s32 %s11, 2
        // Predicated region
        $region37: #{tpu_custom_call.1} parent=35 // pred_check
          %p239 = pneg %p87
        $region38: #{tpu_custom_call.1} parent=35 // pred_check_branch
          %241 = sbr.rel (%p239) target = $region40
        $region39: #{tpu_custom_call.1} parent=35 // pred_region
          %s242 = sand.u32 %s72, 1
          %s243 = scalar_lea.sflag [#allocation3], %s242
          %s244 = sand.u32 %s72, 1
          %s245 = smul.addr %s244, 8
          %s246 = scalar_lea.vmem [#allocation2], %s245
          %247 = dma.done %s243, 128
        $region40: #{tpu_custom_call.1} parent=35 // pred_fallthru
          _
      $region36: #{tpu_custom_call.1} parent=5 // pred_fallthru
        _
    $region6: #{tpu_custom_call.1} parent=1 // loop_footer
      %s15 = sadd.s32 1, %s11
    $region7: #{tpu_custom_call.1} parent=1 // loop_footer_branch
      %10 = sbr.rel target = $region3
    $region8: #{tpu_custom_call.1} parent=1 // loop_exit
      _
    %248 = vsyncpa [#allocation3], 1
    %s249 = scalar_lea.sflag [#allocation3], 1
    %250 = vsyncpa %s249, 1

</llo_original>
